<compile_context>
chip_gen: v6e
topology: v6e:2x2x1
jax: 0.10.0
libtpu: 0.0.40
codegen_flags: <defaults>
</compile_context>

<pallas_src>
import functools

import jax
import jax.numpy as jnp
import numpy as np
from jax.experimental import pallas as pl
from jax.experimental.pallas import tpu as pltpu


def _ell_sum_kernel(w_ref, o_ref):
    """Accumulate per-pin weights over the degree (reduction) grid axis.

    w_ref : (DEG_TILE, TILE_N) f32 VMEM tile of gathered per-pin weights.
    o_ref : (1, TILE_N)        f32 VMEM output block; same block index for
            every reduction step -> stays resident and acts as accumulator.
    """
    k = pl.program_id(1)

    @pl.when(k == 0)
    def _init():
        o_ref[...] = jnp.zeros_like(o_ref)

    # Node axis is the lane axis -> lane-dense (unmasked) stores.
    o_ref[...] += jnp.sum(w_ref[...], axis=0, keepdims=True)


def _ceil_to(x, m):
    return ((x + m - 1) // m) * m


def precompute_ell(flat_nodepin, nodepin_start, pin2net_map, num_nodes,
                   num_nets, *, tile_n=1024, max_deg_tile=64):
    """Static host-side precompute: CSR -> padded ELL of net indices.

    Returns (ell_net int32[(max_deg_p, num_nodes_p)], deg_tile).
    Padding entries hold the sentinel index `num_nets`, which maps to an
    appended 0.0 weight at call time (so no mask is needed in the kernel).
    NOTE: ELL pads every node to the max degree; for netlists with a few
    very-high-degree nodes a CSR tail path would avoid the blow-up.
    """
    fnp = np.asarray(flat_nodepin, dtype=np.int64)
    nps = np.asarray(nodepin_start, dtype=np.int64)
    p2n = np.asarray(pin2net_map, dtype=np.int64)

    deg = nps[1:] - nps[:-1]
    max_deg = int(deg.max()) if deg.size else 0
    max_deg8 = max(8, _ceil_to(max(max_deg, 1), 8))
    if max_deg8 <= max_deg_tile:
        deg_tile = max_deg8            # single reduction step
        max_deg_p = max_deg8
    else:
        deg_tile = max_deg_tile
        max_deg_p = _ceil_to(max_deg8, max_deg_tile)
    num_nodes_p = _ceil_to(max(num_nodes, 1), tile_n)

    # Static composition pin -> net: removes two of the three dependent
    # gathers from the per-call path.
    nodepin2net = p2n[fnp]

    ell = np.full((max_deg_p, num_nodes_p), num_nets, dtype=np.int32)  # sentinel
    if fnp.size:
        node_of_pin = np.repeat(np.arange(num_nodes), deg)
        slot_of_pin = np.arange(fnp.size) - np.repeat(nps[:-1], deg)
        ell[slot_of_pin, node_of_pin] = nodepin2net
    return ell, deg_tile


@functools.partial(jax.jit, static_argnums=(2, 3, 4))
def _pws_forward(net_weights, ell_net, num_nodes, tile_n, deg_tile):
    max_deg_p, num_nodes_p = ell_net.shape

    # Sentinel row: index == num_nets reads weight 0.0 (padding contributes 0).
    nw_ext = jnp.concatenate(
        [net_weights.astype(jnp.float32), jnp.zeros((1,), jnp.float32)])

    # Per-call vectorized gather of per-pin weights, already in ELL layout.
    w_ell = jnp.take(nw_ext, ell_net, axis=0)  # (max_deg_p, num_nodes_p) f32

    grid = (num_nodes_p // tile_n, max_deg_p // deg_tile)
    out = pl.pallas_call(
        _ell_sum_kernel,
        out_shape=jax.ShapeDtypeStruct((1, num_nodes_p), jnp.float32),
        grid_spec=pltpu.PrefetchScalarGridSpec(
            num_scalar_prefetch=0,
            grid=grid,
            in_specs=[pl.BlockSpec((deg_tile, tile_n), lambda i, k: (k, i))],
            out_specs=pl.BlockSpec((1, tile_n), lambda i, k: (0, i)),
        ),
        compiler_params=pltpu.CompilerParams(
            dimension_semantics=("parallel", "arbitrary"),
            vmem_limit_bytes=32 * 1024 * 1024,  # safe on v5e/v6e/v7x
        ),
    )(w_ell)
    return out[0, :num_nodes].astype(net_weights.dtype)


class PinWeightSum:
    """Pallas/TPU drop-in for DREAMPlacePCB PinWeightSum (node-by-node)."""

    def __init__(self, flat_nodepin, nodepin_start, pin2net_map, num_nodes,
                 num_nets, *, tile_n=1024):
        self.num_nodes = int(num_nodes)
        self.tile_n = int(tile_n)
        ell, deg_tile = precompute_ell(
            flat_nodepin, nodepin_start, pin2net_map, self.num_nodes,
            int(num_nets), tile_n=self.tile_n)
        self.deg_tile = int(deg_tile)
        self.ell_net = jnp.asarray(ell)

    def __call__(self, net_weights):
        return _pws_forward(net_weights, self.ell_net, self.num_nodes,
                            self.tile_n, self.deg_tile)


def _reference(net_weights, flat_nodepin, nodepin_start, pin2net_map,
               num_nodes):
    nw = np.asarray(net_weights)
    fnp = np.asarray(flat_nodepin)
    nps = np.asarray(nodepin_start)
    p2n = np.asarray(pin2net_map)
    out = np.zeros((num_nodes,), dtype=nw.dtype)
    for n in range(num_nodes):
        for j in range(nps[n], nps[n + 1]):
            out[n] += nw[p2n[fnp[j]]]
    return out


if __name__ == "__main__":
    # Small, deterministic synthetic netlist.
    num_nodes = 8
    num_nets = 6
    num_pins = 24

    key = jax.random.PRNGKey(0)
    k_w, k_perm, k_p2n = jax.random.split(key, 3)

    # Per-net weights (the per-call input).
    net_weights = jax.random.uniform(k_w, (num_nets,), dtype=jnp.float32)

    # Assign each pin to exactly one node: shuffle pin ids, then split into
    # variable-sized contiguous groups (CSR layout).
    flat_nodepin_np = np.array(
        jax.random.permutation(k_perm, num_pins), dtype=np.int32)
    pins_per_node = np.array([2, 4, 3, 1, 5, 3, 2, 4], dtype=np.int32)
    assert pins_per_node.sum() == num_pins and pins_per_node.size == num_nodes
    nodepin_start_np = np.zeros((num_nodes + 1,), dtype=np.int32)
    nodepin_start_np[1:] = np.cumsum(pins_per_node)

    # Each pin belongs to some net.
    pin2net_np = np.array(
        jax.random.randint(k_p2n, (num_pins,), 0, num_nets), dtype=np.int32)

    pws = PinWeightSum(flat_nodepin_np, nodepin_start_np, pin2net_np,
                       num_nodes, num_nets)
    out = jax.block_until_ready(pws(net_weights))

    ref = _reference(net_weights, flat_nodepin_np, nodepin_start_np,
                     pin2net_np, num_nodes)
    np.testing.assert_allclose(np.asarray(out), ref, rtol=1e-6, atol=1e-6)

    print("KERNEL_OK")
</pallas_src>

<mosaic_0001>
module attributes {stable_mosaic.version = 11 : i64} {
  func.func @_ell_sum_kernel(%arg0: i32, %arg1: i32, %arg2: memref<8x1024xf32, #tpu.memory_space<vmem>>, %arg3: memref<1x1024xf32, #tpu.memory_space<vmem>>) attributes {dimension_semantics = [#tpu.dimension_semantics<parallel>, #tpu.dimension_semantics<arbitrary>], iteration_bounds = array<i64: 1, 1>, scalar_prefetch = 0 : i64, scratch_operands = 0 : i64, tpu.core_type = #tpu.core_type<tc>, window_params = [{transform_indices = @transform_0, window_bounds = array<i64: 8, 1024>}, {transform_indices = @transform_1, window_bounds = array<i64: 1, 1024>}]} {
    %c0_i32 = arith.constant 0 : i32
    %0 = arith.cmpi eq, %arg1, %c0_i32 : i32
    %1 = arith.extui %0 : i1 to i32
    %c0_i32_0 = arith.constant 0 : i32
    %2 = arith.cmpi ne, %1, %c0_i32_0 : i32
    scf.if %2 {
      %cst_6 = arith.constant 0.000000e+00 : f32
      %9 = vector.broadcast %cst_6 : f32 to vector<1x1024xf32>
      %c0_7 = arith.constant 0 : index
      %c0_8 = arith.constant 0 : index
      %10 = vector.load %arg3[%c0_7, %c0_8] : memref<1x1024xf32, #tpu.memory_space<vmem>>, vector<1x1024xf32>
      tpu.vector_store %arg3[%c0_7, %c0_8], %9 {strides = array<i32>} : memref<1x1024xf32, #tpu.memory_space<vmem>>, vector<1x1024xf32>,
    } else {
    }
    %c0 = arith.constant 0 : index
    %c0_1 = arith.constant 0 : index
    %3 = vector.load %arg3[%c0, %c0_1] : memref<1x1024xf32, #tpu.memory_space<vmem>>, vector<1x1024xf32>
    %c0_2 = arith.constant 0 : index
    %c0_3 = arith.constant 0 : index
    %4 = vector.load %arg2[%c0_2, %c0_3] : memref<8x1024xf32, #tpu.memory_space<vmem>>, vector<8x1024xf32>
    %cst = arith.constant dense<0.000000e+00> : vector<1024xf32>
    %5 = vector.multi_reduction <add>, %4, %cst [0] : vector<8x1024xf32> to vector<1024xf32>
    %6 = vector.shape_cast %5 : vector<1024xf32> to vector<1x1024xf32>
    %7 = arith.addf %3, %6 : vector<1x1024xf32>
    %c0_4 = arith.constant 0 : index
    %c0_5 = arith.constant 0 : index
    %8 = vector.load %arg3[%c0_4, %c0_5] : memref<1x1024xf32, #tpu.memory_space<vmem>>, vector<1x1024xf32>
    tpu.vector_store %arg3[%c0_4, %c0_5], %7 {strides = array<i32>} : memref<1x1024xf32, #tpu.memory_space<vmem>>, vector<1x1024xf32>,
    return
  }
  func.func @transform_0(%arg0: i32, %arg1: i32) -> (i32, i32) {
    %c0_i32 = arith.constant 0 : i32
    return %arg1, %arg0 : i32, i32
  }
  func.func @transform_1(%arg0: i32, %arg1: i32) -> (i32, i32) {
    %c0_i32 = arith.constant 0 : i32
    %c0_i32_0 = arith.constant 0 : i32
    return %c0_i32, %arg0 : i32, i32
  }
}

</mosaic_0001>

<llo_original>
// kernel: _pws_forward.1
$region0: #{_pws_forward.1}
  #allocation0 [shape = 'u32[]', space=smem, size = 0x4, offset = 0x4, fixed_abs, tag = 'smem constant byte address 0x4 - core index']
  #allocation1 [shape = 'u32[144,128]{1,0:T(1,128)}', space=vmem, size = 0x12000, scoped, tag = 'internal scratch']
  %s0 = inlined_call_operand.vmem [shape: f32[8,1024], index: 0, kind: input, shape index: {}]
  %s1 = inlined_call_operand.vmem [shape: f32[1,1024], index: 1, kind: output, shape index: {}]
  %s2 = sld [smem:[#allocation0]]
  $region18: #{_pws_forward.1} parent=0
    _
  %s4 = ssub.s32 1, %s2
  %s5 = scalar_select 0, %s4, %s2
  // Predicated region
  $region2: #{_pws_forward.1} parent=0 // pred_check
    _
  $region3: #{_pws_forward.1} parent=0 // pred_check_branch
    %7 = sbr.rel (0) target = $region5
  $region4: #{_pws_forward.1} parent=0 // pred_region
    _
  $region5: #{_pws_forward.1} parent=0 // pred_fallthru
    _
  %p8 = scmp.eq.s32.totalorder 0, 0
  // Predicated region
  $region6: #{_pws_forward.1} parent=0 // pred_check
    %p9 = pneg %p8
  $region7: #{_pws_forward.1} parent=0 // pred_check_branch
    %11 = sbr.rel (%p9) target = $region9
  $region8: #{_pws_forward.1} parent=0 // pred_region
    %12 = vst [vmem:[%s1] sm:$0xff] 0.0
  $region9: #{_pws_forward.1} parent=0 // pred_fallthru
    _
  %v13 = vld [vmem:[%s1] sm:$0xff]
  %v14 = vld [vmem:[%s0] sm:$0xff]
  %v15 = vld [vmem:[%s0 + $0x8] sm:$0xff]
  %v16 = vld [vmem:[%s0 + $0x10] sm:$0xff]
  %v17 = vld [vmem:[%s0 + $0x18] sm:$0xff]
  %v18 = vld [vmem:[%s0 + $0x20] sm:$0xff]
  %v19 = vld [vmem:[%s0 + $0x28] sm:$0xff]
  %v20 = vld [vmem:[%s0 + $0x30] sm:$0xff]
  %v21 = vld [vmem:[%s0 + $0x38] sm:$0xff]
  %v22 = vrot.slane %v14, 4
  %v23 = vadd.f32 %v14, %v22
  %v24 = vrot.slane %v23, 2
  %v25 = vadd.f32 %v23, %v24
  %v26 = vrot.slane %v25, 1
  %v27 = vadd.f32 %v25, %v26
  %v28 = vrot.slane %v15, 4
  %v29 = vadd.f32 %v15, %v28
  %v30 = vrot.slane %v29, 2
  %v31 = vadd.f32 %v29, %v30
  %v32 = vrot.slane %v31, 1
  %v33 = vadd.f32 %v31, %v32
  %v34 = vrot.slane %v16, 4
  %v35 = vadd.f32 %v16, %v34
  %v36 = vrot.slane %v35, 2
  %v37 = vadd.f32 %v35, %v36
  %v38 = vrot.slane %v37, 1
  %v39 = vadd.f32 %v37, %v38
  %v40 = vrot.slane %v17, 4
  %v41 = vadd.f32 %v17, %v40
  %v42 = vrot.slane %v41, 2
  %v43 = vadd.f32 %v41, %v42
  %v44 = vrot.slane %v43, 1
  %v45 = vadd.f32 %v43, %v44
  %v46 = vrot.slane %v18, 4
  %v47 = vadd.f32 %v18, %v46
  %v48 = vrot.slane %v47, 2
  %v49 = vadd.f32 %v47, %v48
  %v50 = vrot.slane %v49, 1
  %v51 = vadd.f32 %v49, %v50
  %v52 = vrot.slane %v19, 4
  %v53 = vadd.f32 %v19, %v52
  %v54 = vrot.slane %v53, 2
  %v55 = vadd.f32 %v53, %v54
  %v56 = vrot.slane %v55, 1
  %v57 = vadd.f32 %v55, %v56
  %v58 = vrot.slane %v20, 4
  %v59 = vadd.f32 %v20, %v58
  %v60 = vrot.slane %v59, 2
  %v61 = vadd.f32 %v59, %v60
  %v62 = vrot.slane %v61, 1
  %v63 = vadd.f32 %v61, %v62
  %v64 = vrot.slane %v21, 4
  %v65 = vadd.f32 %v21, %v64
  %v66 = vrot.slane %v65, 2
  %v67 = vadd.f32 %v65, %v66
  %v68 = vrot.slane %v67, 1
  %v69 = vadd.f32 %v67, %v68
  %v78 = vcombine.low %v27, %v33
  %v79 = vcombine.low %v39, %v45
  %v80 = vcombine.low %v51, %v57
  %v81 = vcombine.low %v63, %v69
  %v83 = vunpack.c.l.s4 1966171168
  %v84 = vunpack.c.0.s8 %v83
  %v85 = vlaneseq
  %v86 = vshrl.u32 %v85, 7
  %v87 = vsub.s32 %v84, %v86
  %v88 = vrot.slane %v78, %v87
  %v90 = vunpack.c.l.s4 1966171168
  %v91 = vunpack.c.0.s8 %v90
  %v92 = vlaneseq
  %v93 = vshrl.u32 %v92, 7
  %v94 = vsub.s32 %v91, %v93
  %v95 = vrot.slane %v79, %v94
  %v97 = vunpack.c.l.s4 1966171168
  %v98 = vunpack.c.0.s8 %v97
  %v99 = vlaneseq
  %v100 = vshrl.u32 %v99, 7
  %v101 = vsub.s32 %v98, %v100
  %v102 = vrot.slane %v80, %v101
  %v104 = vunpack.c.l.s4 1966171168
  %v105 = vunpack.c.0.s8 %v104
  %v106 = vlaneseq
  %v107 = vshrl.u32 %v106, 7
  %v108 = vsub.s32 %v105, %v107
  %v109 = vrot.slane %v81, %v108
  %v110 = vcombine.low %v88, %v95
  %v111 = vcombine.low %v102, %v109
  %v113 = vunpack.c.l.s4 1966171168
  %v114 = vunpack.c.0.s8 %v113
  %v115 = vlaneseq
  %v116 = vshrl.u32 %v115, 7
  %v117 = vsub.s32 %v114, %v116
  %v118 = vrot.slane %v110, %v117
  %v120 = vunpack.c.l.s4 1966171168
  %v121 = vunpack.c.0.s8 %v120
  %v122 = vlaneseq
  %v123 = vshrl.u32 %v122, 7
  %v124 = vsub.s32 %v121, %v123
  %v125 = vrot.slane %v111, %v124
  %v126 = vcombine.low %v118, %v125
  %v128 = vadd.f32 %v13, %v126
  %129 = vst [vmem:[%s1] sm:$0xff] %v128
  // Predicated region
  $region10: #{_pws_forward.1} parent=0 // pred_check
    _
  $region11: #{_pws_forward.1} parent=0 // pred_check_branch
    %131 = sbr.rel (0) target = $region13
  $region12: #{_pws_forward.1} parent=0 // pred_region
    _
  $region13: #{_pws_forward.1} parent=0 // pred_fallthru
    _
  // Predicated region
  $region14: #{_pws_forward.1} parent=0 // pred_check
    _
  $region15: #{_pws_forward.1} parent=0 // pred_check_branch
    %133 = sbr.rel (0) target = $region17
  $region16: #{_pws_forward.1} parent=0 // pred_region
    _
  $region17: #{_pws_forward.1} parent=0 // pred_fallthru
    _

</llo_original>
